<compile_context>
chip_gen: v7x
topology: tpu7x:2x2x1
jax: 0.10.0
libtpu: 0.0.40
codegen_flags: <defaults>
</compile_context>

<pallas_src>
import functools

import jax
import jax.numpy as jnp
from jax.experimental import pallas as pl
from jax.experimental.pallas import tpu as pltpu


def _round_up(n: int, m: int) -> int:
    return ((n + m - 1) // m) * m


# ----------------------------- Pallas kernel ---------------------------------
def _fused_mlp_kernel(*refs, douts):
    """Whole MLP fused in one kernel body; intermediates stay in vregs.

    refs = (x_ref, w0_ref, ..., w{L-1}_ref, b_all_ref, o_ref)
      x_ref:     (TM, D0)             activation tile
      wi_ref:    (Di, D{i+1})         pre-transposed weight (resident across the grid)
      b_all_ref: (L, max_dout)  f32   all biases packed into one ref
      o_ref:     (TM, DL)
    """
    n_layers = len(douts)
    x_ref = refs[0]
    w_refs = refs[1:1 + n_layers]
    b_all_ref = refs[1 + n_layers]
    o_ref = refs[2 + n_layers]

    b_all = b_all_ref[...]                      # (L, max_dout), f32
    h = x_ref[...].astype(jnp.float32)
    for i in range(n_layers):
        w = w_refs[i][...]
        b = b_all[i:i + 1, :douts[i]]           # (1, D{i+1}), f32 (static slice)
        # MXU matmul (bf16 or f32 operands), f32 accumulation; bias+ReLU in f32 on the VPU.
        h = jnp.dot(h.astype(w.dtype), w, preferred_element_type=jnp.float32) + b
        if i != n_layers - 1:
            h = jnp.maximum(h, 0.0)             # fused ReLU
            # Dropout(p) in eval mode == identity.
            # TODO(synk): training-mode dropout (pltpu.prng_seed / prng_random_bits masking).
    o_ref[...] = h.astype(o_ref.dtype)


# --------------------- One-time parameter preparation --------------------------
def prepare_params(params, weight_dtype=jnp.float32):
    """Hoisted out of the hot path (run once per model):
       - transpose every weight to [Din, Dout] for direct LHS[M,K] x RHS[K,N] MXU feed,
       - optionally cast weights to bf16,
       - pack all biases into one (n_layers, max_dout) f32 array."""
    n_layers = len(params)
    douts = [int(w.shape[0]) for (w, _) in params]
    max_dout = max(douts)
    wts = tuple(jnp.asarray(w.T, dtype=weight_dtype) for (w, _) in params)
    b_all = jnp.zeros((n_layers, max_dout), jnp.float32)
    for i, (_, b) in enumerate(params):
        b_all = b_all.at[i, :douts[i]].set(b.astype(jnp.float32))
    return wts, b_all


# ----------------------------- Decoder (MLP) ----------------------------------
def init_decoder_params(key, layers_order):
    """Deterministic synthetic init mimicking nn.Linear default (uniform +/- 1/sqrt(fan_in))."""
    params = []
    n_layers = len(layers_order) - 1
    for i in range(n_layers):
        fan_in, fan_out = layers_order[i], layers_order[i + 1]
        key, kw, kb = jax.random.split(key, 3)
        bound = 1.0 / jnp.sqrt(jnp.float32(fan_in))
        w = jax.random.uniform(kw, (fan_out, fan_in), jnp.float32, -bound, bound)
        b = jax.random.uniform(kb, (fan_out,), jnp.float32, -bound, bound)
        params.append((w, b))
    return params


@jax.jit
def decoder_forward(wts, b_all, x):
    """Single fused pallas_call for the whole MLP (weights already prepped)."""
    B, d_in = x.shape
    n_layers = len(wts)
    douts = tuple(int(w.shape[1]) for w in wts)
    d_out = douts[-1]

    # Batch (M) tiling: fill the MXU rows / both v7x TensorCores for large batches;
    # a single full-array block otherwise (full-array blocks are exempt from (8,128)).
    if B >= 256:
        TM = 256
        Bp = _round_up(B, TM)
        x_in = x if Bp == B else jnp.zeros((Bp, d_in), x.dtype).at[:B, :].set(x)
    else:
        TM = B
        Bp = B
        x_in = x
    grid = (Bp // TM,)

    in_specs = [pl.BlockSpec((TM, d_in), lambda i: (i, 0))]
    for w in wts:
        # Full (unpadded) weight block, resident across all grid steps.
        in_specs.append(pl.BlockSpec(w.shape, lambda i: (0, 0)))
    in_specs.append(pl.BlockSpec(b_all.shape, lambda i: (0, 0)))
    out_specs = pl.BlockSpec((TM, d_out), lambda i: (i, 0))

    # Advisory cost estimate so XLA can overlap neighboring graph work.
    dims = (d_in,) + douts
    flops = 2 * Bp * sum(dims[i] * dims[i + 1] for i in range(n_layers))
    bytes_accessed = (
        x_in.size * x_in.dtype.itemsize
        + sum(w.size * w.dtype.itemsize for w in wts)
        + b_all.size * b_all.dtype.itemsize
        + Bp * d_out * x.dtype.itemsize
    )
    cost = pl.CostEstimate(flops=flops, transcendentals=0, bytes_accessed=bytes_accessed)

    out = pl.pallas_call(
        functools.partial(_fused_mlp_kernel, douts=douts),
        out_shape=jax.ShapeDtypeStruct((Bp, d_out), x.dtype),
        grid=grid,
        in_specs=in_specs,
        out_specs=out_specs,
        compiler_params=pltpu.CompilerParams(dimension_semantics=("parallel",)),
        cost_estimate=cost,
    )(x_in, *wts, b_all)

    return out[:B] if Bp != B else out


def decoder_forward_ref(params, x):
    """Pure-JAX reference for verification."""
    n = len(params)
    h = x
    for i, (w, b) in enumerate(params):
        h = h @ w.T + b
        if i != n - 1:
            h = jnp.maximum(h, 0.0)
    return h


# ----------------------------------- Main --------------------------------------
if __name__ == "__main__":
    layers_order = [32, 64, 48, 16]   # latent -> hidden -> hidden -> output
    batch = 8

    key = jax.random.PRNGKey(0)
    key, kx = jax.random.split(key)
    x = jax.random.normal(kx, (batch, layers_order[0]), jnp.float32)

    params = init_decoder_params(key, layers_order)
    ref = decoder_forward_ref(params, x)

    # f32 weight path (bit-tight vs. the f32 reference).
    wts, b_all = prepare_params(params, weight_dtype=jnp.float32)
    out = jax.block_until_ready(decoder_forward(wts, b_all, x))
    assert out.shape == (batch, layers_order[-1])
    assert jnp.allclose(out, ref, atol=1e-4, rtol=1e-4), "Pallas f32 output mismatch vs reference"

    # bf16 MXU-feed path (review item: bf16-native MXU, halved weight bytes); looser tolerance.
    wts_bf16, b_all_bf16 = prepare_params(params, weight_dtype=jnp.bfloat16)
    out_bf16 = jax.block_until_ready(decoder_forward(wts_bf16, b_all_bf16, x))
    assert out_bf16.shape == (batch, layers_order[-1])
    assert jnp.allclose(out_bf16, ref, atol=5e-2, rtol=5e-2), "Pallas bf16 output mismatch vs reference"

    print("KERNEL_OK")
</pallas_src>

<mosaic_0001>
module attributes {stable_mosaic.version = 11 : i64} {
  func.func @_fused_mlp_kernel(%arg0: i32, %arg1: memref<8x32xf32, #tpu.memory_space<vmem>>, %arg2: memref<32x64xf32, #tpu.memory_space<vmem>>, %arg3: memref<64x48xf32, #tpu.memory_space<vmem>>, %arg4: memref<48x16xf32, #tpu.memory_space<vmem>>, %arg5: memref<3x64xf32, #tpu.memory_space<vmem>>, %arg6: memref<8x16xf32, #tpu.memory_space<vmem>>) attributes {dimension_semantics = [#tpu.dimension_semantics<parallel>], iteration_bounds = array<i64: 1>, scalar_prefetch = 0 : i64, scratch_operands = 0 : i64, tpu.core_type = #tpu.core_type<tc>, window_params = [{transform_indices = @transform_0, window_bounds = array<i64: 8, 32>}, {pipeline_mode = #tpu.pipeline_mode<synchronous>, transform_indices = @transform_1, window_bounds = array<i64: 32, 64>}, {pipeline_mode = #tpu.pipeline_mode<synchronous>, transform_indices = @transform_2, window_bounds = array<i64: 64, 48>}, {pipeline_mode = #tpu.pipeline_mode<synchronous>, transform_indices = @transform_3, window_bounds = array<i64: 48, 16>}, {pipeline_mode = #tpu.pipeline_mode<synchronous>, transform_indices = @transform_4, window_bounds = array<i64: 3, 64>}, {transform_indices = @transform_5, window_bounds = array<i64: 8, 16>}]} {
    %c0 = arith.constant 0 : index
    %c0_0 = arith.constant 0 : index
    %0 = vector.load %arg5[%c0, %c0_0] : memref<3x64xf32, #tpu.memory_space<vmem>>, vector<3x64xf32>
    %c0_1 = arith.constant 0 : index
    %c0_2 = arith.constant 0 : index
    %1 = vector.load %arg1[%c0_1, %c0_2] : memref<8x32xf32, #tpu.memory_space<vmem>>, vector<8x32xf32>
    %c0_3 = arith.constant 0 : index
    %c0_4 = arith.constant 0 : index
    %2 = vector.load %arg2[%c0_3, %c0_4] : memref<32x64xf32, #tpu.memory_space<vmem>>, vector<32x64xf32>
    %3 = vector.extract_strided_slice %0 {offsets = [0, 0], sizes = [1, 64], strides = [1, 1]} : vector<3x64xf32> to vector<1x64xf32>
    %cst = arith.constant dense<0.000000e+00> : vector<8x64xf32>
    %4 = tpu.matmul %1, %2, %cst {dimension_numbers = #tpu.dot_dimension_numbers<[1], [0], [0], [1], [0, 0, 1, 1], [], []>} : vector<8x32xf32>, vector<32x64xf32>, vector<8x64xf32> -> vector<8x64xf32>
    %5 = vector.broadcast %3 : vector<1x64xf32> to vector<8x64xf32>
    %6 = arith.addf %4, %5 : vector<8x64xf32>
    %cst_5 = arith.constant 0.000000e+00 : f32
    %7 = vector.broadcast %cst_5 : f32 to vector<8x64xf32>
    %8 = arith.maximumf %6, %7 : vector<8x64xf32>
    %c0_6 = arith.constant 0 : index
    %c0_7 = arith.constant 0 : index
    %9 = vector.load %arg3[%c0_6, %c0_7] : memref<64x48xf32, #tpu.memory_space<vmem>>, vector<64x48xf32>
    %10 = vector.extract_strided_slice %0 {offsets = [1, 0], sizes = [1, 48], strides = [1, 1]} : vector<3x64xf32> to vector<1x48xf32>
    %cst_8 = arith.constant dense<0.000000e+00> : vector<8x48xf32>
    %11 = tpu.matmul %8, %9, %cst_8 {dimension_numbers = #tpu.dot_dimension_numbers<[1], [0], [0], [1], [0, 0, 1, 1], [], []>} : vector<8x64xf32>, vector<64x48xf32>, vector<8x48xf32> -> vector<8x48xf32>
    %12 = vector.broadcast %10 : vector<1x48xf32> to vector<8x48xf32>
    %13 = arith.addf %11, %12 : vector<8x48xf32>
    %cst_9 = arith.constant 0.000000e+00 : f32
    %14 = vector.broadcast %cst_9 : f32 to vector<8x48xf32>
    %15 = arith.maximumf %13, %14 : vector<8x48xf32>
    %c0_10 = arith.constant 0 : index
    %c0_11 = arith.constant 0 : index
    %16 = vector.load %arg4[%c0_10, %c0_11] : memref<48x16xf32, #tpu.memory_space<vmem>>, vector<48x16xf32>
    %17 = vector.extract_strided_slice %0 {offsets = [2, 0], sizes = [1, 16], strides = [1, 1]} : vector<3x64xf32> to vector<1x16xf32>
    %cst_12 = arith.constant dense<0.000000e+00> : vector<8x16xf32>
    %18 = tpu.matmul %15, %16, %cst_12 {dimension_numbers = #tpu.dot_dimension_numbers<[1], [0], [0], [1], [0, 0, 1, 1], [], []>} : vector<8x48xf32>, vector<48x16xf32>, vector<8x16xf32> -> vector<8x16xf32>
    %19 = vector.broadcast %17 : vector<1x16xf32> to vector<8x16xf32>
    %20 = arith.addf %18, %19 : vector<8x16xf32>
    %c0_13 = arith.constant 0 : index
    %c0_14 = arith.constant 0 : index
    %21 = vector.load %arg6[%c0_13, %c0_14] : memref<8x16xf32, #tpu.memory_space<vmem>>, vector<8x16xf32>
    tpu.vector_store %arg6[%c0_13, %c0_14], %20 {strides = array<i32>} : memref<8x16xf32, #tpu.memory_space<vmem>>, vector<8x16xf32>,
    return
  }
  func.func @transform_0(%arg0: i32) -> (i32, i32) {
    %c0_i32 = arith.constant 0 : i32
    %c0_i32_0 = arith.constant 0 : i32
    return %arg0, %c0_i32 : i32, i32
  }
  func.func @transform_1(%arg0: i32) -> (i32, i32) {
    %c0_i32 = arith.constant 0 : i32
    %c0_i32_0 = arith.constant 0 : i32
    %c0_i32_1 = arith.constant 0 : i32
    return %c0_i32, %c0_i32_0 : i32, i32
  }
  func.func @transform_2(%arg0: i32) -> (i32, i32) {
    %c0_i32 = arith.constant 0 : i32
    %c0_i32_0 = arith.constant 0 : i32
    %c0_i32_1 = arith.constant 0 : i32
    return %c0_i32, %c0_i32_0 : i32, i32
  }
  func.func @transform_3(%arg0: i32) -> (i32, i32) {
    %c0_i32 = arith.constant 0 : i32
    %c0_i32_0 = arith.constant 0 : i32
    %c0_i32_1 = arith.constant 0 : i32
    return %c0_i32, %c0_i32_0 : i32, i32
  }
  func.func @transform_4(%arg0: i32) -> (i32, i32) {
    %c0_i32 = arith.constant 0 : i32
    %c0_i32_0 = arith.constant 0 : i32
    %c0_i32_1 = arith.constant 0 : i32
    return %c0_i32, %c0_i32_0 : i32, i32
  }
  func.func @transform_5(%arg0: i32) -> (i32, i32) {
    %c0_i32 = arith.constant 0 : i32
    %c0_i32_0 = arith.constant 0 : i32
    return %arg0, %c0_i32 : i32, i32
  }
}

</mosaic_0001>

<llo_original>
// kernel: decoder_forward.1
$region0: #{decoder_forward.1}
  #allocation0 [shape = 'u32[]', space=smem, size = 0x4, offset = 0x4, fixed_abs, tag = 'smem constant byte address 0x4 - core index']
  #allocation1 [shape = 'u32[144,128]{1,0:T(1,128)}', space=vmem, size = 0x12000, scoped, tag = 'internal scratch']
  %s0 = inlined_call_operand.vmem [shape: f32[8,32], index: 0, kind: input, shape index: {}]
  %s1 = inlined_call_operand.vmem [shape: f32[32,64], index: 1, kind: input, shape index: {}]
  %s2 = inlined_call_operand.vmem [shape: f32[64,48], index: 2, kind: input, shape index: {}]
  %s3 = inlined_call_operand.vmem [shape: f32[48,16], index: 3, kind: input, shape index: {}]
  %s4 = inlined_call_operand.vmem [shape: f32[3,64], index: 4, kind: input, shape index: {}]
  %s5 = inlined_call_operand.hbm [shape: f32[8,16], index: 5, kind: output, shape index: {}]
  %s6 = sld [smem:[#allocation0]]
  $region30: #{decoder_forward.1} parent=0
    _
  %s8 = ssub.s32 1, %s6
  %s9 = scalar_select 0, %s8, %s6
  $region1: #{decoder_forward.1} parent=0
    #allocation2 [shape = 'u8[4096]{0}', space=vmem, size = 0x1000, scoped, tag = 'output window, operand 0, single buffered']
    #allocation3 [shape = 's32[1]{0}', space=sflag, size = 0x4, scoped, tag = 'scoped memory for decoder_forward.1']
    %10 = vsyncpa [#allocation3], 0
    // Predicated region
    $region2: #{decoder_forward.1} parent=1 // pred_check
      _
    $region3: #{decoder_forward.1} parent=1 // pred_check_branch
      %12 = sbr.rel (0) target = $region5
    $region4: #{decoder_forward.1} parent=1 // pred_region
      _
    $region5: #{decoder_forward.1} parent=1 // pred_fallthru
      _
    // Predicated region
    $region6: #{decoder_forward.1} parent=1 // pred_check
      _
    $region7: #{decoder_forward.1} parent=1 // pred_check_branch
      %14 = sbr.rel (0) target = $region9
    $region8: #{decoder_forward.1} parent=1 // pred_region
      _
    $region9: #{decoder_forward.1} parent=1 // pred_fallthru
      _
    // Predicated region
    $region10: #{decoder_forward.1} parent=1 // pred_check
      _
    $region11: #{decoder_forward.1} parent=1 // pred_check_branch
      %16 = sbr.rel (0) target = $region13
    $region12: #{decoder_forward.1} parent=1 // pred_region
      _
    $region13: #{decoder_forward.1} parent=1 // pred_fallthru
      _
    // Predicated region
    $region14: #{decoder_forward.1} parent=1 // pred_check
      _
    $region15: #{decoder_forward.1} parent=1 // pred_check_branch
      %18 = sbr.rel (0) target = $region17
    $region16: #{decoder_forward.1} parent=1 // pred_region
      _
    $region17: #{decoder_forward.1} parent=1 // pred_fallthru
      _
    // Predicated region
    $region18: #{decoder_forward.1} parent=1 // pred_check
      _
    $region19: #{decoder_forward.1} parent=1 // pred_check_branch
      %20 = sbr.rel (0) target = $region21
    $region20: #{decoder_forward.1} parent=1 // pred_region
      _
    $region21: #{decoder_forward.1} parent=1 // pred_fallthru
      _
    %v21 = vld [vmem:[%s4] sm:$0x7]
    %v22 = vld [vmem:[%s0] sm:$0xff]
    %v23 = vld [vmem:[%s1] sm:$0xff]
    %v24 = vld [vmem:[%s1 + $0x8] sm:$0xff]
    %v25 = vld [vmem:[%s1 + $0x10] sm:$0xff]
    %v26 = vld [vmem:[%s1 + $0x18] sm:$0xff]
    %v27 = vlaneseq
    %v28 = vshrl.u32 %v27, 7
    %v29 = vsub.s32 0, %v28
    %v30 = vrot.slane %v21, %v29
    %vm31 = vcmask 261120
    %v33 = vsel %vm31, %v22, 0
    %35 = vmatprep.subr.mxu0 0.0
    %36 = vmatpush1.msra.mxu0 %v23
    %37 = vmatprep.subr.mxu0 0.0
    %38 = vmatpush1.msra.mxu0 %v24
    %39 = vmatprep.subr.mxu0 0.0
    %40 = vmatpush1.msra.mxu0 %v25
    %41 = vmatprep.subr.mxu0 0.0
    %42 = vmatpush1.msra.mxu0 %v26
    %43 = vmatprep.subr.mxu0 0.0
    %44 = vmatpush1.msra.mxu0 0.0
    %45 = vmatprep.subr.mxu0 0.0
    %46 = vmatpush1.msra.mxu0 0.0
    %47 = vmatprep.subr.mxu0 0.0
    %48 = vmatpush1.msra.mxu0 0.0
    %49 = vmatprep.subr.mxu0 0.0
    %50 = vmatpush1.msra.mxu0 0.0
    %51 = vmatprep.subr.mxu0 0.0
    %52 = vmatpush1.msra.mxu0 0.0
    %53 = vmatprep.subr.mxu0 0.0
    %54 = vmatpush1.msra.mxu0 0.0
    %55 = vmatprep.subr.mxu0 0.0
    %56 = vmatpush1.msra.mxu0 0.0
    %57 = vmatprep.subr.mxu0 0.0
    %58 = vmatpush1.msra.mxu0 0.0
    %59 = vmatprep.subr.mxu0 0.0
    %60 = vmatpush1.msra.mxu0 0.0
    %61 = vmatprep.subr.mxu0 0.0
    %62 = vmatpush1.msra.mxu0 0.0
    %63 = vmatprep.subr.mxu0 0.0
    %64 = vmatpush1.msra.mxu0 0.0
    %65 = vmatprep.subr.mxu0 0.0
    %66 = vmatpush1.msra.mxu0 0.0
    %67 = vmatprep.subr.mxu0 0.0
    %68 = vmatpush1.msra.mxu0 0.0
    %69 = vmatprep.subr.mxu0 0.0
    %70 = vmatpush1.msra.mxu0 0.0
    %71 = vmatprep.subr.mxu0 0.0
    %72 = vmatpush1.msra.mxu0 0.0
    %73 = vmatprep.subr.mxu0 0.0
    %74 = vmatpush1.msra.mxu0 0.0
    %75 = vmatprep.subr.mxu0 0.0
    %76 = vmatpush1.msra.mxu0 0.0
    %77 = vmatprep.subr.mxu0 0.0
    %78 = vmatpush1.msra.mxu0 0.0
    %79 = vmatprep.subr.mxu0 0.0
    %80 = vmatpush1.msra.mxu0 0.0
    %81 = vmatprep.subr.mxu0 0.0
    %82 = vmatpush1.msra.mxu0 0.0
    %83 = vmatprep.subr.mxu0 0.0
    %84 = vmatpush1.msra.mxu0 0.0
    %85 = vmatprep.subr.mxu0 0.0
    %86 = vmatpush1.msra.mxu0 0.0
    %87 = vmatprep.subr.mxu0 0.0
    %88 = vmatpush1.msra.mxu0 0.0
    %89 = vmatprep.subr.mxu0 0.0
    %90 = vmatpush1.msra.mxu0 0.0
    %91 = vmatprep.subr.mxu0 0.0
    %92 = vmatpush1.msra.mxu0 0.0
    %93 = vmatprep.subr.mxu0 0.0
    %94 = vmatpush1.msra.mxu0 0.0
    %95 = vmatprep.subr.mxu0 0.0
    %96 = vmatpush1.msra.mxu0 0.0
    %97 = vmatprep.subr.mxu0 0.0
    %98 = vmatpush1.msra.mxu0 0.0
    %99 = vmatprep.mubr.f32.mxu0 0.0
    %100 = vmatmul.mubr.f32.gmra.mrb[0].mxu0 %v33
    %v101 = vpop.f32.mrb[0].mxu0
    %v102 = vadd.f32 %v30, %v101
    %v103 = vpop.f32.mrb[0].mxu0
    %104 = vdwg.mxu0
    %v105 = vmax.f32 %v102, 0.0
    %v106 = vld [vmem:[%s2] sm:$0xff]
    %v107 = vld [vmem:[%s2 + $0x8] sm:$0xff]
    %v108 = vld [vmem:[%s2 + $0x10] sm:$0xff]
    %v109 = vld [vmem:[%s2 + $0x18] sm:$0xff]
    %v110 = vld [vmem:[%s2 + $0x20] sm:$0xff]
    %v111 = vld [vmem:[%s2 + $0x28] sm:$0xff]
    %v112 = vld [vmem:[%s2 + $0x30] sm:$0xff]
    %v113 = vld [vmem:[%s2 + $0x38] sm:$0xff]
    %v114 = vlaneseq
    %v115 = vshrl.u32 %v114, 7
    %v116 = vsub.s32 1, %v115
    %v117 = vrot.slane %v21, %v116
    %vm118 = vcmask 523264
    %v120 = vsel %vm118, %v105, 0
    %122 = vmatprep.subr.mxu0 0.0
    %123 = vmatpush1.msra.mxu0 %v106
    %124 = vmatprep.subr.mxu0 0.0
    %125 = vmatpush1.msra.mxu0 %v107
    %126 = vmatprep.subr.mxu0 0.0
    %127 = vmatpush1.msra.mxu0 %v108
    %128 = vmatprep.subr.mxu0 0.0
    %129 = vmatpush1.msra.mxu0 %v109
    %130 = vmatprep.subr.mxu0 0.0
    %131 = vmatpush1.msra.mxu0 %v110
    %132 = vmatprep.subr.mxu0 0.0
    %133 = vmatpush1.msra.mxu0 %v111
    %134 = vmatprep.subr.mxu0 0.0
    %135 = vmatpush1.msra.mxu0 %v112
    %136 = vmatprep.subr.mxu0 0.0
    %137 = vmatpush1.msra.mxu0 %v113
    %138 = vmatprep.subr.mxu0 0.0
    %139 = vmatpush1.msra.mxu0 0.0
    %140 = vmatprep.subr.mxu0 0.0
    %141 = vmatpush1.msra.mxu0 0.0
    %142 = vmatprep.subr.mxu0 0.0
    %143 = vmatpush1.msra.mxu0 0.0
    %144 = vmatprep.subr.mxu0 0.0
    %145 = vmatpush1.msra.mxu0 0.0
    %146 = vmatprep.subr.mxu0 0.0
    %147 = vmatpush1.msra.mxu0 0.0
    %148 = vmatprep.subr.mxu0 0.0
    %149 = vmatpush1.msra.mxu0 0.0
    %150 = vmatprep.subr.mxu0 0.0
    %151 = vmatpush1.msra.mxu0 0.0
    %152 = vmatprep.subr.mxu0 0.0
    %153 = vmatpush1.msra.mxu0 0.0
    %154 = vmatprep.subr.mxu0 0.0
    %155 = vmatpush1.msra.mxu0 0.0
    %156 = vmatprep.subr.mxu0 0.0
    %157 = vmatpush1.msra.mxu0 0.0
    %158 = vmatprep.subr.mxu0 0.0
    %159 = vmatpush1.msra.mxu0 0.0
    %160 = vmatprep.subr.mxu0 0.0
    %161 = vmatpush1.msra.mxu0 0.0
    %162 = vmatprep.subr.mxu0 0.0
    %163 = vmatpush1.msra.mxu0 0.0
    %164 = vmatprep.subr.mxu0 0.0
    %165 = vmatpush1.msra.mxu0 0.0
    %166 = vmatprep.subr.mxu0 0.0
    %167 = vmatpush1.msra.mxu0 0.0
    %168 = vmatprep.subr.mxu0 0.0
    %169 = vmatpush1.msra.mxu0 0.0
    %170 = vmatprep.subr.mxu0 0.0
    %171 = vmatpush1.msra.mxu0 0.0
    %172 = vmatprep.subr.mxu0 0.0
    %173 = vmatpush1.msra.mxu0 0.0
    %174 = vmatprep.subr.mxu0 0.0
    %175 = vmatpush1.msra.mxu0 0.0
    %176 = vmatprep.subr.mxu0 0.0
    %177 = vmatpush1.msra.mxu0 0.0
    %178 = vmatprep.subr.mxu0 0.0
    %179 = vmatpush1.msra.mxu0 0.0
    %180 = vmatprep.subr.mxu0 0.0
    %181 = vmatpush1.msra.mxu0 0.0
    %182 = vmatprep.subr.mxu0 0.0
    %183 = vmatpush1.msra.mxu0 0.0
    %184 = vmatprep.subr.mxu0 0.0
    %185 = vmatpush1.msra.mxu0 0.0
    %186 = vmatprep.mubr.f32.mxu0 0.0
    %187 = vmatmul.mubr.f32.gmra.mrb[0].mxu0 %v120
    %v188 = vpop.f32.mrb[0].mxu0
    %v189 = vadd.f32 %v117, %v188
    %v190 = vpop.f32.mrb[0].mxu0
    %191 = vdwg.mxu0
    %v192 = vmax.f32 %v189, 0.0
    %v193 = vld [vmem:[%s3] sm:$0xff]
    %v194 = vld [vmem:[%s3 + $0x8] sm:$0xff]
    %v195 = vld [vmem:[%s3 + $0x10] sm:$0xff]
    %v196 = vld [vmem:[%s3 + $0x18] sm:$0xff]
    %v197 = vld [vmem:[%s3 + $0x20] sm:$0xff]
    %v198 = vld [vmem:[%s3 + $0x28] sm:$0xff]
    %v199 = vlaneseq
    %v200 = vshrl.u32 %v199, 7
    %v201 = vsub.s32 2, %v200
    %v202 = vrot.slane %v21, %v201
    %vm203 = vcmask 392192
    %v205 = vsel %vm203, %v192, 0
    %207 = vmatprep.subr.mxu0 0.0
    %208 = vmatpush1.msra.mxu0 %v193
    %209 = vmatprep.subr.mxu0 0.0
    %210 = vmatpush1.msra.mxu0 %v194
    %211 = vmatprep.subr.mxu0 0.0
    %212 = vmatpush1.msra.mxu0 %v195
    %213 = vmatprep.subr.mxu0 0.0
    %214 = vmatpush1.msra.mxu0 %v196
    %215 = vmatprep.subr.mxu0 0.0
    %216 = vmatpush1.msra.mxu0 %v197
    %217 = vmatprep.subr.mxu0 0.0
    %218 = vmatpush1.msra.mxu0 %v198
    %219 = vmatprep.subr.mxu0 0.0
    %220 = vmatpush1.msra.mxu0 0.0
    %221 = vmatprep.subr.mxu0 0.0
    %222 = vmatpush1.msra.mxu0 0.0
    %223 = vmatprep.subr.mxu0 0.0
    %224 = vmatpush1.msra.mxu0 0.0
    %225 = vmatprep.subr.mxu0 0.0
    %226 = vmatpush1.msra.mxu0 0.0
    %227 = vmatprep.subr.mxu0 0.0
    %228 = vmatpush1.msra.mxu0 0.0
    %229 = vmatprep.subr.mxu0 0.0
    %230 = vmatpush1.msra.mxu0 0.0
    %231 = vmatprep.subr.mxu0 0.0
    %232 = vmatpush1.msra.mxu0 0.0
    %233 = vmatprep.subr.mxu0 0.0
    %234 = vmatpush1.msra.mxu0 0.0
    %235 = vmatprep.subr.mxu0 0.0
    %236 = vmatpush1.msra.mxu0 0.0
    %237 = vmatprep.subr.mxu0 0.0
    %238 = vmatpush1.msra.mxu0 0.0
    %239 = vmatprep.subr.mxu0 0.0
    %240 = vmatpush1.msra.mxu0 0.0
    %241 = vmatprep.subr.mxu0 0.0
    %242 = vmatpush1.msra.mxu0 0.0
    %243 = vmatprep.subr.mxu0 0.0
    %244 = vmatpush1.msra.mxu0 0.0
    %245 = vmatprep.subr.mxu0 0.0
    %246 = vmatpush1.msra.mxu0 0.0
    %247 = vmatprep.subr.mxu0 0.0
    %248 = vmatpush1.msra.mxu0 0.0
    %249 = vmatprep.subr.mxu0 0.0
    %250 = vmatpush1.msra.mxu0 0.0
    %251 = vmatprep.subr.mxu0 0.0
    %252 = vmatpush1.msra.mxu0 0.0
    %253 = vmatprep.subr.mxu0 0.0
    %254 = vmatpush1.msra.mxu0 0.0
    %255 = vmatprep.subr.mxu0 0.0
    %256 = vmatpush1.msra.mxu0 0.0
    %257 = vmatprep.subr.mxu0 0.0
    %258 = vmatpush1.msra.mxu0 0.0
    %259 = vmatprep.subr.mxu0 0.0
    %260 = vmatpush1.msra.mxu0 0.0
    %261 = vmatprep.subr.mxu0 0.0
    %262 = vmatpush1.msra.mxu0 0.0
    %263 = vmatprep.subr.mxu0 0.0
    %264 = vmatpush1.msra.mxu0 0.0
    %265 = vmatprep.subr.mxu0 0.0
    %266 = vmatpush1.msra.mxu0 0.0
    %267 = vmatprep.subr.mxu0 0.0
    %268 = vmatpush1.msra.mxu0 0.0
    %269 = vmatprep.subr.mxu0 0.0
    %270 = vmatpush1.msra.mxu0 0.0
    %271 = vmatprep.mubr.f32.mxu0 0.0
    %272 = vmatmul.mubr.f32.gmra.mrb[0].mxu0 %v205
    %v273 = vpop.f32.mrb[0].mxu0
    %v274 = vadd.f32 %v202, %v273
    %v275 = vpop.f32.mrb[0].mxu0
    %276 = vdwg.mxu0
    %vm277 = vcmask 130048
    %278 = vst.msk [vmem:[#allocation2] sm:$0xff] %vm277, %v274
    // Predicated region
    $region22: #{decoder_forward.1} parent=1 // pred_check
      _
    $region23: #{decoder_forward.1} parent=1 // pred_check_branch
      %280 = sbr.rel (0) target = $region25
    $region24: #{decoder_forward.1} parent=1 // pred_region
      %s282 = ssub.s32 128, 128
      %283 = vsyncadd [#allocation3], %s282
      %s285 = sshll.u32 [#allocation2], 4
      %s286 = int_to_ptr.vmem [resolvable:$true] %s285
      %288 = dma.vmem_to_hbm [thread:$0]  %s286, 128, %s5, [#allocation3]
    $region25: #{decoder_forward.1} parent=1 // pred_fallthru
      _
    // Predicated region
    $region26: #{decoder_forward.1} parent=1 // pred_check
      _
    $region27: #{decoder_forward.1} parent=1 // pred_check_branch
      %290 = sbr.rel (0) target = $region29
    $region28: #{decoder_forward.1} parent=1 // pred_region
      %291 = dma.done [#allocation3], 128
    $region29: #{decoder_forward.1} parent=1 // pred_fallthru
      _
    %292 = vsyncpa [#allocation3], 1

</llo_original>
